<compile_context>
chip_gen: v7x
topology: tpu7x:2x2x1
jax: 0.10.0
libtpu: 0.0.40
codegen_flags: <defaults>
</compile_context>

<pallas_src>
import functools

import jax
import jax.numpy as jnp
from jax.experimental import pallas as pl
from jax.experimental.pallas import tpu as pltpu


def _actor_kernel(x_ref, w1_ref, b1_ref, w2_ref, b2_ref, w3_ref, b3_ref, out_ref):
    """Fused MLP: bf16 MXU operands (cast in-kernel), f32 accumulate + elementwise."""
    x = x_ref[...].astype(jnp.bfloat16)
    w1 = w1_ref[...].astype(jnp.bfloat16)
    w2 = w2_ref[...].astype(jnp.bfloat16)
    w3 = w3_ref[...].astype(jnp.bfloat16)

    # fc1 + ReLU (f32 accumulate / bias / relu, back to bf16 for the next MXU pass)
    h1 = jnp.dot(x, w1, preferred_element_type=jnp.float32) + b1_ref[...]
    h1 = jnp.maximum(h1, 0.0).astype(jnp.bfloat16)

    # fc2 + ReLU
    h2 = jnp.dot(h1, w2, preferred_element_type=jnp.float32) + b2_ref[...]
    h2 = jnp.maximum(h2, 0.0).astype(jnp.bfloat16)

    # mu + sigmoid (lax.logistic -> EUP slot; output stays f32 like the torch module)
    z = jnp.dot(h2, w3, preferred_element_type=jnp.float32) + b3_ref[...]
    out_ref[...] = jax.nn.sigmoid(z)


@functools.partial(jax.jit, static_argnames=("block_b",))
def actor_forward(state, w1, b1, w2, b2, w3, b3, *, block_b=1024):
    """Pallas wrapper. state: (B, input_dims) float32 -> (B, n_actions) float32."""
    B, in_dims = state.shape
    fc1_dims = w1.shape[1]
    fc2_dims = w2.shape[1]
    n_actions = w3.shape[1]

    # Batch tiling: one full-extent block when it fits (no padding, no partial block);
    # otherwise fixed tiles (multiple of 8) with the ragged tail handled by Pallas.
    max_blk = max(8, (block_b // 8) * 8)
    if B <= max_blk:
        blk = B                      # block == full batch dim -> always legal
    else:
        blk = max_blk                # multiple of 8; last block may be partial
    grid = (pl.cdiv(B, blk),)

    in_specs = [
        pl.BlockSpec((blk, in_dims), lambda i: (i, 0)),        # state tile (f32)
        pl.BlockSpec((in_dims, fc1_dims), lambda i: (0, 0)),   # w1 (full, grid-invariant)
        pl.BlockSpec((1, fc1_dims), lambda i: (0, 0)),         # b1
        pl.BlockSpec((fc1_dims, fc2_dims), lambda i: (0, 0)),  # w2
        pl.BlockSpec((1, fc2_dims), lambda i: (0, 0)),         # b2
        pl.BlockSpec((fc2_dims, n_actions), lambda i: (0, 0)), # w3
        pl.BlockSpec((1, n_actions), lambda i: (0, 0)),        # b3
    ]
    # Output block last dim equals the full array dim (n_actions) -> legal, no padding.
    out_spec = pl.BlockSpec((blk, n_actions), lambda i: (i, 0))

    return pl.pallas_call(
        _actor_kernel,
        out_shape=jax.ShapeDtypeStruct((B, n_actions), jnp.float32),
        grid_spec=pltpu.PrefetchScalarGridSpec(
            num_scalar_prefetch=0,
            grid=grid,
            in_specs=in_specs,
            out_specs=out_spec,
        ),
        compiler_params=pltpu.CompilerParams(
            dimension_semantics=("parallel",),
        ),
    )(state, w1, b1, w2, b2, w3, b3)


def init_actor_params(key, input_dims, fc1_dims, fc2_dims, n_actions):
    """Deterministic init mirroring ActorNetwork._init_layer.

    torch.nn.Linear weight has shape (out, in); _init_layer uses
    fan_in = weight.size()[0] = out_features and draws U(-limit, limit) with
    limit = scale / sqrt(fan_in) for both weight and bias (mirrors the torch quirk).
    Weights are stored transposed as (in, out) so the kernel computes x @ W.
    """
    def init_layer(k, in_f, out_f, scale=1.0):
        limit = scale / jnp.sqrt(jnp.float32(out_f))
        kw, kb = jax.random.split(k)
        w = jax.random.uniform(kw, (in_f, out_f), jnp.float32, -limit, limit)
        b = jax.random.uniform(kb, (1, out_f), jnp.float32, -limit, limit)
        return w, b

    k1, k2, k3 = jax.random.split(key, 3)
    w1, b1 = init_layer(k1, input_dims, fc1_dims, scale=1.0)
    w2, b2 = init_layer(k2, fc1_dims, fc2_dims, scale=1.0)
    w3, b3 = init_layer(k3, fc2_dims, n_actions, scale=0.003)
    return w1, b1, w2, b2, w3, b3


def actor_forward_ref(state, w1, b1, w2, b2, w3, b3):
    """Pure-JAX reference matching the PyTorch forward semantics (f32)."""
    h1 = jax.nn.relu(state @ w1 + b1)
    h2 = jax.nn.relu(h1 @ w2 + b2)
    return jax.nn.sigmoid(h2 @ w3 + b3)


# TODO(synk): checkpoint save/load and the Adam optimizer from the torch module are
# host-side training utilities with no kernel equivalent; only forward() is implemented.

if __name__ == "__main__":
    # Small shapes consistent with the module's forward:
    # input_dims=16, fc1=32, fc2=32, n_actions=8.
    input_dims, fc1_dims, fc2_dims, n_actions = 16, 32, 32, 8

    key = jax.random.PRNGKey(0)
    k_params, k_state1, k_state2 = jax.random.split(key, 3)
    params = init_actor_params(k_params, input_dims, fc1_dims, fc2_dims, n_actions)

    # Test 1: batch=8 (single full-extent tile).
    state8 = jax.random.normal(k_state1, (8, input_dims), jnp.float32)
    out8 = jax.block_until_ready(actor_forward(state8, *params))
    ref8 = actor_forward_ref(state8, *params)
    assert out8.shape == (8, n_actions)
    # bf16 matmul operands -> relaxed tolerance (output is a sigmoid in [0, 1]).
    assert jnp.allclose(out8, ref8, atol=2e-2, rtol=2e-2), "mismatch vs reference (B=8)"

    # Test 2: batch=20 (non-multiple-of-8 batch; still a single full-extent tile,
    # no padding or slicing anywhere).
    state20 = jax.random.normal(k_state2, (20, input_dims), jnp.float32)
    out20 = jax.block_until_ready(actor_forward(state20, *params))
    ref20 = actor_forward_ref(state20, *params)
    assert out20.shape == (20, n_actions)
    assert jnp.allclose(out20, ref20, atol=2e-2, rtol=2e-2), "mismatch vs reference (B=20)"

    print("KERNEL_OK")
</pallas_src>

<mosaic_0001>
module attributes {stable_mosaic.version = 11 : i64} {
  func.func @_actor_kernel(%arg0: i32, %arg1: memref<8x16xf32, #tpu.memory_space<vmem>>, %arg2: memref<16x32xf32, #tpu.memory_space<vmem>>, %arg3: memref<1x32xf32, #tpu.memory_space<vmem>>, %arg4: memref<32x32xf32, #tpu.memory_space<vmem>>, %arg5: memref<1x32xf32, #tpu.memory_space<vmem>>, %arg6: memref<32x8xf32, #tpu.memory_space<vmem>>, %arg7: memref<1x8xf32, #tpu.memory_space<vmem>>, %arg8: memref<8x8xf32, #tpu.memory_space<vmem>>) attributes {dimension_semantics = [#tpu.dimension_semantics<parallel>], iteration_bounds = array<i64: 1>, scalar_prefetch = 0 : i64, scratch_operands = 0 : i64, tpu.core_type = #tpu.core_type<tc>, window_params = [{transform_indices = @transform_0, window_bounds = array<i64: 8, 16>}, {pipeline_mode = #tpu.pipeline_mode<synchronous>, transform_indices = @transform_1, window_bounds = array<i64: 16, 32>}, {pipeline_mode = #tpu.pipeline_mode<synchronous>, transform_indices = @transform_2, window_bounds = array<i64: 1, 32>}, {pipeline_mode = #tpu.pipeline_mode<synchronous>, transform_indices = @transform_3, window_bounds = array<i64: 32, 32>}, {pipeline_mode = #tpu.pipeline_mode<synchronous>, transform_indices = @transform_4, window_bounds = array<i64: 1, 32>}, {pipeline_mode = #tpu.pipeline_mode<synchronous>, transform_indices = @transform_5, window_bounds = array<i64: 32, 8>}, {pipeline_mode = #tpu.pipeline_mode<synchronous>, transform_indices = @transform_6, window_bounds = array<i64: 1, 8>}, {transform_indices = @transform_7, window_bounds = array<i64: 8, 8>}]} {
    %c0 = arith.constant 0 : index
    %c0_0 = arith.constant 0 : index
    %0 = vector.load %arg1[%c0, %c0_0] : memref<8x16xf32, #tpu.memory_space<vmem>>, vector<8x16xf32>
    %1 = arith.truncf %0 : vector<8x16xf32> to vector<8x16xbf16>
    %c0_1 = arith.constant 0 : index
    %c0_2 = arith.constant 0 : index
    %2 = vector.load %arg2[%c0_1, %c0_2] : memref<16x32xf32, #tpu.memory_space<vmem>>, vector<16x32xf32>
    %3 = arith.truncf %2 : vector<16x32xf32> to vector<16x32xbf16>
    %c0_3 = arith.constant 0 : index
    %c0_4 = arith.constant 0 : index
    %4 = vector.load %arg4[%c0_3, %c0_4] : memref<32x32xf32, #tpu.memory_space<vmem>>, vector<32x32xf32>
    %5 = arith.truncf %4 : vector<32x32xf32> to vector<32x32xbf16>
    %c0_5 = arith.constant 0 : index
    %c0_6 = arith.constant 0 : index
    %6 = vector.load %arg6[%c0_5, %c0_6] : memref<32x8xf32, #tpu.memory_space<vmem>>, vector<32x8xf32>
    %7 = arith.truncf %6 : vector<32x8xf32> to vector<32x8xbf16>
    %cst = arith.constant dense<0.000000e+00> : vector<8x32xf32>
    %8 = tpu.matmul %1, %3, %cst {dimension_numbers = #tpu.dot_dimension_numbers<[1], [0], [0], [1], [0, 0, 1, 1], [], []>} : vector<8x16xbf16>, vector<16x32xbf16>, vector<8x32xf32> -> vector<8x32xf32>
    %c0_7 = arith.constant 0 : index
    %c0_8 = arith.constant 0 : index
    %9 = vector.load %arg3[%c0_7, %c0_8] : memref<1x32xf32, #tpu.memory_space<vmem>>, vector<1x32xf32>
    %10 = vector.broadcast %9 : vector<1x32xf32> to vector<8x32xf32>
    %11 = arith.addf %8, %10 : vector<8x32xf32>
    %cst_9 = arith.constant 0.000000e+00 : f32
    %12 = vector.broadcast %cst_9 : f32 to vector<8x32xf32>
    %13 = arith.maximumf %11, %12 : vector<8x32xf32>
    %14 = arith.truncf %13 : vector<8x32xf32> to vector<8x32xbf16>
    %cst_10 = arith.constant dense<0.000000e+00> : vector<8x32xf32>
    %15 = tpu.matmul %14, %5, %cst_10 {dimension_numbers = #tpu.dot_dimension_numbers<[1], [0], [0], [1], [0, 0, 1, 1], [], []>} : vector<8x32xbf16>, vector<32x32xbf16>, vector<8x32xf32> -> vector<8x32xf32>
    %c0_11 = arith.constant 0 : index
    %c0_12 = arith.constant 0 : index
    %16 = vector.load %arg5[%c0_11, %c0_12] : memref<1x32xf32, #tpu.memory_space<vmem>>, vector<1x32xf32>
    %17 = vector.broadcast %16 : vector<1x32xf32> to vector<8x32xf32>
    %18 = arith.addf %15, %17 : vector<8x32xf32>
    %cst_13 = arith.constant 0.000000e+00 : f32
    %19 = vector.broadcast %cst_13 : f32 to vector<8x32xf32>
    %20 = arith.maximumf %18, %19 : vector<8x32xf32>
    %21 = arith.truncf %20 : vector<8x32xf32> to vector<8x32xbf16>
    %cst_14 = arith.constant dense<0.000000e+00> : vector<8x8xf32>
    %22 = tpu.matmul %21, %7, %cst_14 {dimension_numbers = #tpu.dot_dimension_numbers<[1], [0], [0], [1], [0, 0, 1, 1], [], []>} : vector<8x32xbf16>, vector<32x8xbf16>, vector<8x8xf32> -> vector<8x8xf32>
    %c0_15 = arith.constant 0 : index
    %c0_16 = arith.constant 0 : index
    %23 = vector.load %arg7[%c0_15, %c0_16] : memref<1x8xf32, #tpu.memory_space<vmem>>, vector<1x8xf32>
    %24 = vector.broadcast %23 : vector<1x8xf32> to vector<8x8xf32>
    %25 = arith.addf %22, %24 : vector<8x8xf32>
    %26 = arith.negf %25 : vector<8x8xf32>
    %27 = math.exp %26 : vector<8x8xf32>
    %cst_17 = arith.constant 1.000000e+00 : f32
    %28 = vector.broadcast %cst_17 : f32 to vector<8x8xf32>
    %29 = arith.addf %28, %27 : vector<8x8xf32>
    %30 = arith.divf %28, %29 : vector<8x8xf32>
    %c0_18 = arith.constant 0 : index
    %c0_19 = arith.constant 0 : index
    %31 = vector.load %arg8[%c0_18, %c0_19] : memref<8x8xf32, #tpu.memory_space<vmem>>, vector<8x8xf32>
    tpu.vector_store %arg8[%c0_18, %c0_19], %30 {strides = array<i32>} : memref<8x8xf32, #tpu.memory_space<vmem>>, vector<8x8xf32>,
    return
  }
  func.func @transform_0(%arg0: i32) -> (i32, i32) {
    %c0_i32 = arith.constant 0 : i32
    %c0_i32_0 = arith.constant 0 : i32
    return %arg0, %c0_i32 : i32, i32
  }
  func.func @transform_1(%arg0: i32) -> (i32, i32) {
    %c0_i32 = arith.constant 0 : i32
    %c0_i32_0 = arith.constant 0 : i32
    %c0_i32_1 = arith.constant 0 : i32
    return %c0_i32, %c0_i32_0 : i32, i32
  }
  func.func @transform_2(%arg0: i32) -> (i32, i32) {
    %c0_i32 = arith.constant 0 : i32
    %c0_i32_0 = arith.constant 0 : i32
    %c0_i32_1 = arith.constant 0 : i32
    return %c0_i32, %c0_i32_0 : i32, i32
  }
  func.func @transform_3(%arg0: i32) -> (i32, i32) {
    %c0_i32 = arith.constant 0 : i32
    %c0_i32_0 = arith.constant 0 : i32
    %c0_i32_1 = arith.constant 0 : i32
    return %c0_i32, %c0_i32_0 : i32, i32
  }
  func.func @transform_4(%arg0: i32) -> (i32, i32) {
    %c0_i32 = arith.constant 0 : i32
    %c0_i32_0 = arith.constant 0 : i32
    %c0_i32_1 = arith.constant 0 : i32
    return %c0_i32, %c0_i32_0 : i32, i32
  }
  func.func @transform_5(%arg0: i32) -> (i32, i32) {
    %c0_i32 = arith.constant 0 : i32
    %c0_i32_0 = arith.constant 0 : i32
    %c0_i32_1 = arith.constant 0 : i32
    return %c0_i32, %c0_i32_0 : i32, i32
  }
  func.func @transform_6(%arg0: i32) -> (i32, i32) {
    %c0_i32 = arith.constant 0 : i32
    %c0_i32_0 = arith.constant 0 : i32
    %c0_i32_1 = arith.constant 0 : i32
    return %c0_i32, %c0_i32_0 : i32, i32
  }
  func.func @transform_7(%arg0: i32) -> (i32, i32) {
    %c0_i32 = arith.constant 0 : i32
    %c0_i32_0 = arith.constant 0 : i32
    return %arg0, %c0_i32 : i32, i32
  }
}

</mosaic_0001>

<llo_original>
// kernel: actor_forward.1
$region0: #{actor_forward.1}
  #allocation0 [shape = 'u32[]', space=smem, size = 0x4, offset = 0x4, fixed_abs, tag = 'smem constant byte address 0x4 - core index']
  #allocation1 [shape = 'u32[144,128]{1,0:T(1,128)}', space=vmem, size = 0x12000, scoped, tag = 'internal scratch']
  %s0 = inlined_call_operand.hbm [shape: f32[8,16], index: 0, kind: input, shape index: {}]
  %s1 = inlined_call_operand.vmem [shape: f32[16,32], index: 1, kind: input, shape index: {}]
  %s2 = inlined_call_operand.vmem [shape: f32[1,32], index: 2, kind: input, shape index: {}]
  %s3 = inlined_call_operand.vmem [shape: f32[32,32], index: 3, kind: input, shape index: {}]
  %s4 = inlined_call_operand.vmem [shape: f32[1,32], index: 4, kind: input, shape index: {}]
  %s5 = inlined_call_operand.vmem [shape: f32[32,8], index: 5, kind: input, shape index: {}]
  %s6 = inlined_call_operand.vmem [shape: f32[1,8], index: 6, kind: input, shape index: {}]
  %s7 = inlined_call_operand.hbm [shape: f32[8,8], index: 7, kind: output, shape index: {}]
  %s8 = sld [smem:[#allocation0]]
  $region42: #{actor_forward.1} parent=0
    _
  %s10 = ssub.s32 1, %s8
  %s11 = scalar_select 0, %s10, %s8
  $region1: #{actor_forward.1} parent=0
    #allocation2 [shape = 'u8[4096]{0}', space=vmem, size = 0x1000, scoped, tag = 'input window, operand 0, single buffered']
    #allocation3 [shape = 's32[1]{0}', space=sflag, size = 0x4, scoped, tag = 'scoped memory for actor_forward.1']
    #allocation4 [shape = 's32[1]{0}', space=sflag, size = 0x4, scoped, tag = 'scoped memory for actor_forward.1']
    #allocation5 [shape = 'u8[4096]{0}', space=vmem, size = 0x1000, scoped, tag = 'output window, operand 0, single buffered']
    %12 = vsyncpa [#allocation3], 0
    %13 = vsyncpa [#allocation4], 0
    // Predicated region
    $region2: #{actor_forward.1} parent=1 // pred_check
      _
    $region3: #{actor_forward.1} parent=1 // pred_check_branch
      %15 = sbr.rel (0) target = $region5
    $region4: #{actor_forward.1} parent=1 // pred_region
      %s17 = ssub.s32 128, 128
      %18 = vsyncadd [#allocation3], %s17
      %s20 = sshll.u32 [#allocation2], 4
      %s21 = int_to_ptr.vmem [resolvable:$true] %s20
      %23 = dma.hbm_to_vmem [thread:$0]  %s0, 128, %s21, [#allocation3]
    $region5: #{actor_forward.1} parent=1 // pred_fallthru
      _
    // Predicated region
    $region6: #{actor_forward.1} parent=1 // pred_check
      _
    $region7: #{actor_forward.1} parent=1 // pred_check_branch
      %25 = sbr.rel (0) target = $region9
    $region8: #{actor_forward.1} parent=1 // pred_region
      _
    $region9: #{actor_forward.1} parent=1 // pred_fallthru
      _
    // Predicated region
    $region10: #{actor_forward.1} parent=1 // pred_check
      _
    $region11: #{actor_forward.1} parent=1 // pred_check_branch
      %27 = sbr.rel (0) target = $region13
    $region12: #{actor_forward.1} parent=1 // pred_region
      _
    $region13: #{actor_forward.1} parent=1 // pred_fallthru
      _
    // Predicated region
    $region14: #{actor_forward.1} parent=1 // pred_check
      _
    $region15: #{actor_forward.1} parent=1 // pred_check_branch
      %29 = sbr.rel (0) target = $region17
    $region16: #{actor_forward.1} parent=1 // pred_region
      _
    $region17: #{actor_forward.1} parent=1 // pred_fallthru
      _
    // Predicated region
    $region18: #{actor_forward.1} parent=1 // pred_check
      _
    $region19: #{actor_forward.1} parent=1 // pred_check_branch
      %31 = sbr.rel (0) target = $region21
    $region20: #{actor_forward.1} parent=1 // pred_region
      _
    $region21: #{actor_forward.1} parent=1 // pred_fallthru
      _
    // Predicated region
    $region22: #{actor_forward.1} parent=1 // pred_check
      _
    $region23: #{actor_forward.1} parent=1 // pred_check_branch
      %33 = sbr.rel (0) target = $region25
    $region24: #{actor_forward.1} parent=1 // pred_region
      _
    $region25: #{actor_forward.1} parent=1 // pred_fallthru
      _
    // Predicated region
    $region26: #{actor_forward.1} parent=1 // pred_check
      _
    $region27: #{actor_forward.1} parent=1 // pred_check_branch
      %35 = sbr.rel (0) target = $region29
    $region28: #{actor_forward.1} parent=1 // pred_region
      _
    $region29: #{actor_forward.1} parent=1 // pred_fallthru
      _
    // Predicated region
    $region30: #{actor_forward.1} parent=1 // pred_check
      _
    $region31: #{actor_forward.1} parent=1 // pred_check_branch
      %37 = sbr.rel (0) target = $region33
    $region32: #{actor_forward.1} parent=1 // pred_region
      %38 = dma.done [#allocation3], 128
    $region33: #{actor_forward.1} parent=1 // pred_fallthru
      _
    %v40 = vld [vmem:[#allocation2] sm:$0xff]
    %v41 = vpack.c.bf16 %v40, %v40
    %v42 = vld [vmem:[%s1] sm:$0xff]
    %v43 = vld [vmem:[%s1 + $0x8] sm:$0xff]
    %v44 = vpack.c.bf16 %v43, %v42
    %v45 = vld [vmem:[%s3] sm:$0xff]
    %v46 = vld [vmem:[%s3 + $0x8] sm:$0xff]
    %v47 = vld [vmem:[%s3 + $0x10] sm:$0xff]
    %v48 = vld [vmem:[%s3 + $0x18] sm:$0xff]
    %v49 = vpack.c.bf16 %v46, %v45
    %v50 = vpack.c.bf16 %v48, %v47
    %v51 = vld [vmem:[%s5] sm:$0xff]
    %v52 = vld [vmem:[%s5 + $0x8] sm:$0xff]
    %v53 = vld [vmem:[%s5 + $0x10] sm:$0xff]
    %v54 = vld [vmem:[%s5 + $0x18] sm:$0xff]
    %v55 = vpack.c.bf16 %v52, %v51
    %v56 = vpack.c.bf16 %v54, %v53
    %v57 = vld [vmem:[%s2] sm:$0x1]
    %v59 = vlaneseq
    %v60 = vshrl.u32 %v59, 7
    %v61 = vsub.s32 0, %v60
    %v62 = vrot.slane %v57, %v61
    %vm64 = vcmask 130048
    %v66 = vsel %vm64, %v41, 0
    %68 = vmatprep.subr.bf16.mxu0 0
    %69 = vmatpush1.bf16.msra.mxu0 %v44
    %70 = vmatprep.subr.bf16.mxu0 0
    %71 = vmatpush1.bf16.msra.mxu0 0
    %72 = vmatprep.subr.bf16.mxu0 0
    %73 = vmatpush1.bf16.msra.mxu0 0
    %74 = vmatprep.subr.bf16.mxu0 0
    %75 = vmatpush1.bf16.msra.mxu0 0
    %76 = vmatprep.subr.bf16.mxu0 0
    %77 = vmatpush1.bf16.msra.mxu0 0
    %78 = vmatprep.subr.bf16.mxu0 0
    %79 = vmatpush1.bf16.msra.mxu0 0
    %80 = vmatprep.subr.bf16.mxu0 0
    %81 = vmatpush1.bf16.msra.mxu0 0
    %82 = vmatprep.subr.bf16.mxu0 0
    %83 = vmatpush1.bf16.msra.mxu0 0
    %84 = vmatprep.subr.bf16.mxu0 0
    %85 = vmatpush1.bf16.msra.mxu0 0
    %86 = vmatprep.subr.bf16.mxu0 0
    %87 = vmatpush1.bf16.msra.mxu0 0
    %88 = vmatprep.subr.bf16.mxu0 0
    %89 = vmatpush1.bf16.msra.mxu0 0
    %90 = vmatprep.subr.bf16.mxu0 0
    %91 = vmatpush1.bf16.msra.mxu0 0
    %92 = vmatprep.subr.bf16.mxu0 0
    %93 = vmatpush1.bf16.msra.mxu0 0
    %94 = vmatprep.subr.bf16.mxu0 0
    %95 = vmatpush1.bf16.msra.mxu0 0
    %96 = vmatprep.subr.bf16.mxu0 0
    %97 = vmatpush1.bf16.msra.mxu0 0
    %98 = vmatprep.subr.bf16.mxu0 0
    %99 = vmatpush1.bf16.msra.mxu0 0
    %100 = vmatprep.mubr.bf16.mxu0 0
    %101 = vmatmul.mubr.bf16.gmra.mrb[0].mxu0 %v66
    %v102 = vpop.f32.mrb[0].mxu0
    %v103 = vadd.f32 %v62, %v102
    %v104 = vpop.f32.mrb[0].mxu0
    %v105 = vpop.f32.mrb[0].mxu0
    %v106 = vpop.f32.mrb[0].mxu0
    %107 = vdwg.mxu0
    %v108 = vmax.f32 %v103, 0.0
    %v109 = vpack.c.bf16 %v108, %v108
    %v110 = vld [vmem:[%s4] sm:$0x1]
    %v112 = vlaneseq
    %v113 = vshrl.u32 %v112, 7
    %v114 = vsub.s32 0, %v113
    %v115 = vrot.slane %v110, %v114
    %vm117 = vcmask 261120
    %v119 = vsel %vm117, %v109, 0
    %121 = vmatprep.subr.bf16.mxu0 0
    %122 = vmatpush1.bf16.msra.mxu0 %v49
    %123 = vmatprep.subr.bf16.mxu0 0
    %124 = vmatpush1.bf16.msra.mxu0 %v50
    %125 = vmatprep.subr.bf16.mxu0 0
    %126 = vmatpush1.bf16.msra.mxu0 0
    %127 = vmatprep.subr.bf16.mxu0 0
    %128 = vmatpush1.bf16.msra.mxu0 0
    %129 = vmatprep.subr.bf16.mxu0 0
    %130 = vmatpush1.bf16.msra.mxu0 0
    %131 = vmatprep.subr.bf16.mxu0 0
    %132 = vmatpush1.bf16.msra.mxu0 0
    %133 = vmatprep.subr.bf16.mxu0 0
    %134 = vmatpush1.bf16.msra.mxu0 0
    %135 = vmatprep.subr.bf16.mxu0 0
    %136 = vmatpush1.bf16.msra.mxu0 0
    %137 = vmatprep.subr.bf16.mxu0 0
    %138 = vmatpush1.bf16.msra.mxu0 0
    %139 = vmatprep.subr.bf16.mxu0 0
    %140 = vmatpush1.bf16.msra.mxu0 0
    %141 = vmatprep.subr.bf16.mxu0 0
    %142 = vmatpush1.bf16.msra.mxu0 0
    %143 = vmatprep.subr.bf16.mxu0 0
    %144 = vmatpush1.bf16.msra.mxu0 0
    %145 = vmatprep.subr.bf16.mxu0 0
    %146 = vmatpush1.bf16.msra.mxu0 0
    %147 = vmatprep.subr.bf16.mxu0 0
    %148 = vmatpush1.bf16.msra.mxu0 0
    %149 = vmatprep.subr.bf16.mxu0 0
    %150 = vmatpush1.bf16.msra.mxu0 0
    %151 = vmatprep.subr.bf16.mxu0 0
    %152 = vmatpush1.bf16.msra.mxu0 0
    %153 = vmatprep.mubr.bf16.mxu0 0
    %154 = vmatmul.mubr.bf16.gmra.mrb[0].mxu0 %v119
    %v155 = vpop.f32.mrb[0].mxu0
    %v156 = vadd.f32 %v115, %v155
    %v157 = vpop.f32.mrb[0].mxu0
    %v158 = vpop.f32.mrb[0].mxu0
    %v159 = vpop.f32.mrb[0].mxu0
    %160 = vdwg.mxu0
    %v161 = vmax.f32 %v156, 0.0
    %v162 = vpack.c.bf16 %v161, %v161
    %v163 = vld [vmem:[%s6] sm:$0x1]
    %v165 = vlaneseq
    %v166 = vshrl.u32 %v165, 7
    %v167 = vsub.s32 0, %v166
    %v168 = vrot.slane %v163, %v167
    %v171 = vsel %vm117, %v162, 0
    %173 = vmatprep.subr.bf16.mxu0 0
    %174 = vmatpush1.bf16.msra.mxu0 %v55
    %175 = vmatprep.subr.bf16.mxu0 0
    %176 = vmatpush1.bf16.msra.mxu0 %v56
    %177 = vmatprep.subr.bf16.mxu0 0
    %178 = vmatpush1.bf16.msra.mxu0 0
    %179 = vmatprep.subr.bf16.mxu0 0
    %180 = vmatpush1.bf16.msra.mxu0 0
    %181 = vmatprep.subr.bf16.mxu0 0
    %182 = vmatpush1.bf16.msra.mxu0 0
    %183 = vmatprep.subr.bf16.mxu0 0
    %184 = vmatpush1.bf16.msra.mxu0 0
    %185 = vmatprep.subr.bf16.mxu0 0
    %186 = vmatpush1.bf16.msra.mxu0 0
    %187 = vmatprep.subr.bf16.mxu0 0
    %188 = vmatpush1.bf16.msra.mxu0 0
    %189 = vmatprep.subr.bf16.mxu0 0
    %190 = vmatpush1.bf16.msra.mxu0 0
    %191 = vmatprep.subr.bf16.mxu0 0
    %192 = vmatpush1.bf16.msra.mxu0 0
    %193 = vmatprep.subr.bf16.mxu0 0
    %194 = vmatpush1.bf16.msra.mxu0 0
    %195 = vmatprep.subr.bf16.mxu0 0
    %196 = vmatpush1.bf16.msra.mxu0 0
    %197 = vmatprep.subr.bf16.mxu0 0
    %198 = vmatpush1.bf16.msra.mxu0 0
    %199 = vmatprep.subr.bf16.mxu0 0
    %200 = vmatpush1.bf16.msra.mxu0 0
    %201 = vmatprep.subr.bf16.mxu0 0
    %202 = vmatpush1.bf16.msra.mxu0 0
    %203 = vmatprep.subr.bf16.mxu0 0
    %204 = vmatpush1.bf16.msra.mxu0 0
    %205 = vmatprep.mubr.bf16.mxu0 0
    %206 = vmatmul.mubr.bf16.gmra.mrb[0].mxu0 %v171
    %v207 = vpop.f32.mrb[0].mxu0
    %v208 = vadd.f32 %v168, %v207
    %v209 = vpop.f32.mrb[0].mxu0
    %v210 = vpop.f32.mrb[0].mxu0
    %v211 = vpop.f32.mrb[0].mxu0
    %212 = vdwg.mxu0
    %v213 = vxor.u32 %v208, 2147483648
    %v214 = vmul.f32 %v213, 1.442695
    %v215 = vpow.pop %v214
    %v216 = vadd.f32 %v215, 1.0
    %v217 = vrcp.pop %v216
    %v218 = vmul.f32 1.0, %v217
    %vm219 = vcmask 64512
    %220 = vst.msk [vmem:[#allocation5] sm:$0xff] %vm219, %v218
    // Predicated region
    $region34: #{actor_forward.1} parent=1 // pred_check
      _
    $region35: #{actor_forward.1} parent=1 // pred_check_branch
      %222 = sbr.rel (0) target = $region37
    $region36: #{actor_forward.1} parent=1 // pred_region
      %s224 = ssub.s32 128, 128
      %225 = vsyncadd [#allocation4], %s224
      %s227 = sshll.u32 [#allocation5], 4
      %s228 = int_to_ptr.vmem [resolvable:$true] %s227
      %230 = dma.vmem_to_hbm [thread:$0]  %s228, 128, %s7, [#allocation4]
    $region37: #{actor_forward.1} parent=1 // pred_fallthru
      _
    // Predicated region
    $region38: #{actor_forward.1} parent=1 // pred_check
      _
    $region39: #{actor_forward.1} parent=1 // pred_check_branch
      %232 = sbr.rel (0) target = $region41
    $region40: #{actor_forward.1} parent=1 // pred_region
      %233 = dma.done [#allocation4], 128
    $region41: #{actor_forward.1} parent=1 // pred_fallthru
      _
    %234 = vsyncpa [#allocation3], 1
    %235 = vsyncpa [#allocation4], 1

</llo_original>
